<compile_context>
chip_gen: v7x
topology: tpu7x:2x2x1
jax: 0.10.0
libtpu: 0.0.40
codegen_flags: <defaults>
</compile_context>

<pallas_src>
import functools
import math

import jax
import jax.numpy as jnp
from jax.experimental import pallas as pl
from jax.experimental.pallas import tpu as pltpu

# ------------------------- synthetic config (cfg.model[...]_encoder) -------------------------
B = 2                  # batch
L = 8                  # sequence length (dim that is max-pooled)
ONEHOT_N = 8           # modules['feat_id']   : arc=one_hot,  num_embeddings=8
BINARY_N = 7           # modules['feat_flag'] : arc=binary,   num_embeddings=7
UNSQ_NORM = 10.0       # modules['feat_val']  : arc=unsqueeze, norm_value=10
INPUT_DIM = ONEHOT_N + BINARY_N + 1    # cfg.input_dim  = 16
HIDDEN_DIM = 32                        # cfg.hidden_dim
OUTPUT_DIM = 32                        # cfg.output_dim
LN_EPS = 1e-5

# parameter-slab row offsets (every block starts on a sublane (8-row) boundary)
_W0_ROW = 0                            # W0          rows  0..15  (16, H)
_B0_ROW = _W0_ROW + INPUT_DIM          # b0,g0,be0   rows 16..23  (3 used + 5 pad)
_W1_ROW = _B0_ROW + 8                  # W1          rows 24..55  (H, O)
_B1_ROW = _W1_ROW + HIDDEN_DIM         # b1,g1,be1   rows 56..63  (3 used + 5 pad)
_SLAB_ROWS = _B1_ROW + 8               # 64


def _layernorm(y, gamma, beta):
    mu = jnp.mean(y, axis=-1, keepdims=True)
    var = jnp.mean((y - mu) ** 2, axis=-1, keepdims=True)
    return (y - mu) * jax.lax.rsqrt(var + LN_EPS) * gamma + beta


# ---------------------------------- fused Pallas kernel ----------------------------------
def _fused_maxpool_encoder_kernel(data_ref, param_ref, o_ref, *, batch, seq):
    """Whole MaxPool1DEncoder forward for all (batch*seq) rows in one invocation."""
    bl = batch * seq

    # --- unpack the single (BL, 4) f32 data slab: lane0=id, lane1=flag, lane2=val ---
    d = data_ref[...]
    ids = d[:, 0:1].astype(jnp.int32)                     # exact: id   < 8
    flags = d[:, 1:2].astype(jnp.int32)                   # exact: flag < 128
    val = d[:, 2:3] * (1.0 / UNSQ_NORM)                   # (BL, 1)

    # --- build ALL 16 feature lanes in-vreg (pure VPU select chain, no concat/roll) ---
    lane = jax.lax.broadcasted_iota(jnp.int32, (bl, INPUT_DIM), 1)
    onehot = (lane == ids).astype(jnp.float32)                                  # lanes 0..7
    shift = jnp.maximum(ONEHOT_N + BINARY_N - 1 - lane, 0)                      # MSB-first
    bits = jnp.bitwise_and(jnp.right_shift(flags, shift), 1).astype(jnp.float32)  # lanes 8..14
    feat = jnp.where(lane < ONEHOT_N, onehot,
                     jnp.where(lane < ONEHOT_N + BINARY_N, bits,
                               jnp.broadcast_to(val, (bl, INPUT_DIM))))         # lane 15

    # --- static, sublane-aligned slices of the single (64, 32) parameter slab ---
    w0 = param_ref[_W0_ROW:_W0_ROW + INPUT_DIM, :]        # (16, H)
    p0 = param_ref[_B0_ROW:_B0_ROW + 8, :]                # rows: b0, g0, be0, pad...
    w1 = param_ref[_W1_ROW:_W1_ROW + HIDDEN_DIM, :]       # (H, O)
    p1 = param_ref[_B1_ROW:_B1_ROW + 8, :]                # rows: b1, g1, be1, pad...

    # --- fc_block 0: single MXU dot -> LayerNorm -> ReLU ---
    y = jnp.dot(feat, w0, preferred_element_type=jnp.float32) + p0[0:1]
    y = jnp.maximum(_layernorm(y, p0[1:2], p0[2:3]), 0.0)

    # --- fc_block 1 ---
    z = jnp.dot(y, w1, preferred_element_type=jnp.float32) + p1[0:1]
    z = jnp.maximum(_layernorm(z, p1[1:2], p1[2:3]), 0.0)                       # (BL, O)

    # --- vectorized max over the sequence dim + one store ---
    o_ref[...] = jnp.max(z.reshape(batch, seq, OUTPUT_DIM), axis=1)


def maxpool1d_encoder_call(data, param_slab, *, batch, seq):
    bl = batch * seq
    flops = 2 * bl * (INPUT_DIM * HIDDEN_DIM + HIDDEN_DIM * OUTPUT_DIM)
    bytes_accessed = (data.size + param_slab.size + batch * OUTPUT_DIM) * 4
    kern = functools.partial(_fused_maxpool_encoder_kernel, batch=batch, seq=seq)
    vmem = pl.BlockSpec(memory_space=pltpu.MemorySpace.VMEM)
    return pl.pallas_call(
        kern,
        out_shape=jax.ShapeDtypeStruct((batch, OUTPUT_DIM), jnp.float32),
        in_specs=[vmem, vmem],           # no grid -> whole arrays, no pipeline machinery
        out_specs=vmem,
        cost_estimate=pl.CostEstimate(flops=flops, transcendentals=0,
                                      bytes_accessed=bytes_accessed),
    )(data, param_slab)


# ------------------------------------- parameters -------------------------------------
def _linear_init(key, fan_in, fan_out):
    kw, kb = jax.random.split(key)
    bound = 1.0 / math.sqrt(fan_in)
    w = jax.random.uniform(kw, (fan_in, fan_out), jnp.float32, -bound, bound)
    b = jax.random.uniform(kb, (fan_out,), jnp.float32, -bound, bound)
    return w, b


def init_params(key):
    k0, k1 = jax.random.split(key)
    w0, b0 = _linear_init(k0, INPUT_DIM, HIDDEN_DIM)
    w1, b1 = _linear_init(k1, HIDDEN_DIM, OUTPUT_DIM)
    return {
        'mlp0': (w0, b0, jnp.ones((HIDDEN_DIM,), jnp.float32), jnp.zeros((HIDDEN_DIM,), jnp.float32)),
        'mlp1': (w1, b1, jnp.ones((OUTPUT_DIM,), jnp.float32), jnp.zeros((OUTPUT_DIM,), jnp.float32)),
    }


def pack_params(params):
    """Concatenate every parameter into one (64, 32) slab with 8-row-aligned blocks."""
    assert HIDDEN_DIM == OUTPUT_DIM, "slab packing assumes equal hidden/output widths"
    w0, b0, g0, be0 = params['mlp0']
    w1, b1, g1, be1 = params['mlp1']
    pad = jnp.zeros((5, HIDDEN_DIM), jnp.float32)
    slab = jnp.concatenate([
        w0,                                        # rows  0..15
        b0[None, :], g0[None, :], be0[None, :], pad,   # rows 16..23
        w1,                                        # rows 24..55
        b1[None, :], g1[None, :], be1[None, :], pad,   # rows 56..63
    ], axis=0)
    assert slab.shape == (_SLAB_ROWS, HIDDEN_DIM)
    return slab


# --------------------------------- forward (module) ---------------------------------
def maxpool1d_encoder_forward(x_dict, params):
    bb, ls = x_dict['feat_id'].shape
    bl = bb * ls
    # Pack all three per-row features into ONE (BL, 4) f32 slab (single input DMA).
    data = jnp.stack([
        x_dict['feat_id'].reshape(bl).astype(jnp.float32),
        x_dict['feat_flag'].reshape(bl).astype(jnp.float32),
        x_dict['feat_val'].reshape(bl).astype(jnp.float32),
        jnp.zeros((bl,), jnp.float32),
    ], axis=-1)
    slab = pack_params(params)
    return maxpool1d_encoder_call(data, slab, batch=bb, seq=ls)


# ------------------------------- pure-JAX reference -------------------------------
def reference_forward(x_dict, params):
    onehot = jax.nn.one_hot(x_dict['feat_id'], ONEHOT_N, dtype=jnp.float32)
    shifts = jnp.arange(BINARY_N - 1, -1, -1, dtype=jnp.int32)        # MSB first
    bits = ((x_dict['feat_flag'][..., None] >> shifts) & 1).astype(jnp.float32)
    val = (x_dict['feat_val'] / UNSQ_NORM)[..., None]
    hcat = jnp.concatenate([onehot, bits, val], axis=-1)              # (B, L, 16)

    def fc(x, w, b, g, be):
        y = jnp.dot(x, w, precision=jax.lax.Precision.HIGHEST) + b
        mu = y.mean(-1, keepdims=True)
        var = ((y - mu) ** 2).mean(-1, keepdims=True)
        y = (y - mu) * jax.lax.rsqrt(var + LN_EPS) * g + be
        return jnp.maximum(y, 0.0)

    hcat = fc(hcat, *params['mlp0'])
    hcat = fc(hcat, *params['mlp1'])
    return jnp.max(hcat, axis=-2)


# ---------------------------------------- main ----------------------------------------
if __name__ == "__main__":
    key = jax.random.PRNGKey(0)
    k_param, k_id, k_flag, k_val = jax.random.split(key, 4)
    params = init_params(k_param)

    x_dict = {
        'feat_id':   jax.random.randint(k_id, (B, L), 0, ONEHOT_N, dtype=jnp.int32),
        'feat_flag': jax.random.randint(k_flag, (B, L), 0, 2 ** BINARY_N, dtype=jnp.int32),
        'feat_val':  jax.random.uniform(k_val, (B, L), jnp.float32, 0.0, 10.0),
    }

    out = maxpool1d_encoder_forward(x_dict, params)
    jax.block_until_ready(out)
    assert out.shape == (B, OUTPUT_DIM)

    ref = reference_forward(x_dict, params)
    assert jnp.allclose(out, ref, rtol=1e-2, atol=1e-2), "mismatch vs pure-JAX reference"

    print("KERNEL_OK")
</pallas_src>

<mosaic_0001>
module attributes {stable_mosaic.version = 11 : i64} {
  func.func @_fused_maxpool_encoder_kernel(%arg0: memref<16x4xf32, #tpu.memory_space<vmem>>, %arg1: memref<64x32xf32, #tpu.memory_space<vmem>>, %arg2: memref<2x32xf32, #tpu.memory_space<vmem>>) attributes {dimension_semantics = [], scalar_prefetch = 0 : i64, scratch_operands = 0 : i64, tpu.core_type = #tpu.core_type<tc>} {
    %c0 = arith.constant 0 : index
    %c0_0 = arith.constant 0 : index
    %0 = vector.load %arg0[%c0, %c0_0] : memref<16x4xf32, #tpu.memory_space<vmem>>, vector<16x4xf32>
    %1 = vector.extract_strided_slice %0 {offsets = [0, 0], sizes = [16, 1], strides = [1, 1]} : vector<16x4xf32> to vector<16x1xf32>
    %2 = arith.fptosi %1 : vector<16x1xf32> to vector<16x1xi32>
    %3 = vector.extract_strided_slice %0 {offsets = [0, 1], sizes = [16, 1], strides = [1, 1]} : vector<16x4xf32> to vector<16x1xf32>
    %4 = arith.fptosi %3 : vector<16x1xf32> to vector<16x1xi32>
    %5 = vector.extract_strided_slice %0 {offsets = [0, 2], sizes = [16, 1], strides = [1, 1]} : vector<16x4xf32> to vector<16x1xf32>
    %cst = arith.constant 1.000000e-01 : f32
    %6 = vector.broadcast %cst : f32 to vector<16x1xf32>
    %7 = arith.mulf %5, %6 : vector<16x1xf32>
    %8 = tpu.iota {dimensions = array<i32: 1>} : vector<16x16xi32>
    %9 = vector.broadcast %2 : vector<16x1xi32> to vector<16x16xi32>
    %10 = arith.cmpi eq, %8, %9 : vector<16x16xi32>
    %11 = arith.extui %10 : vector<16x16xi1> to vector<16x16xi32>
    %12 = arith.sitofp %11 : vector<16x16xi32> to vector<16x16xf32>
    %c14_i32 = arith.constant 14 : i32
    %13 = vector.broadcast %c14_i32 : i32 to vector<16x16xi32>
    %14 = arith.subi %13, %8 : vector<16x16xi32>
    %c0_i32 = arith.constant 0 : i32
    %15 = vector.broadcast %c0_i32 : i32 to vector<16x16xi32>
    %16 = arith.maxsi %14, %15 : vector<16x16xi32>
    %17 = vector.broadcast %4 : vector<16x1xi32> to vector<16x16xi32>
    %18 = arith.shrsi %17, %16 : vector<16x16xi32>
    %c1_i32 = arith.constant 1 : i32
    %19 = vector.broadcast %c1_i32 : i32 to vector<16x16xi32>
    %20 = arith.andi %18, %19 : vector<16x16xi32>
    %21 = arith.sitofp %20 : vector<16x16xi32> to vector<16x16xf32>
    %c8_i32 = arith.constant 8 : i32
    %22 = vector.broadcast %c8_i32 : i32 to vector<16x16xi32>
    %23 = arith.cmpi slt, %8, %22 : vector<16x16xi32>
    %c15_i32 = arith.constant 15 : i32
    %24 = vector.broadcast %c15_i32 : i32 to vector<16x16xi32>
    %25 = arith.cmpi slt, %8, %24 : vector<16x16xi32>
    %26 = vector.shape_cast %7 : vector<16x1xf32> to vector<16x1xf32>
    %27 = vector.broadcast %26 : vector<16x1xf32> to vector<16x16xf32>
    %28 = arith.select %25, %21, %27 : vector<16x16xi1>, vector<16x16xf32>
    %29 = arith.select %23, %12, %28 : vector<16x16xi1>, vector<16x16xf32>
    %c0_1 = arith.constant 0 : index
    %c0_2 = arith.constant 0 : index
    %30 = vector.load %arg1[%c0_1, %c0_2] : memref<64x32xf32, #tpu.memory_space<vmem>>, vector<16x32xf32>
    %c16 = arith.constant 16 : index
    %c0_3 = arith.constant 0 : index
    %31 = vector.load %arg1[%c16, %c0_3] : memref<64x32xf32, #tpu.memory_space<vmem>>, vector<8x32xf32>
    %c24 = arith.constant 24 : index
    %c0_4 = arith.constant 0 : index
    %32 = vector.load %arg1[%c24, %c0_4] : memref<64x32xf32, #tpu.memory_space<vmem>>, vector<32x32xf32>
    %c56 = arith.constant 56 : index
    %c0_5 = arith.constant 0 : index
    %33 = vector.load %arg1[%c56, %c0_5] : memref<64x32xf32, #tpu.memory_space<vmem>>, vector<8x32xf32>
    %cst_6 = arith.constant dense<0.000000e+00> : vector<16x32xf32>
    %34 = tpu.matmul %29, %30, %cst_6 {dimension_numbers = #tpu.dot_dimension_numbers<[1], [0], [0], [1], [0, 0, 1, 1], [], []>} : vector<16x16xf32>, vector<16x32xf32>, vector<16x32xf32> -> vector<16x32xf32>
    %35 = vector.extract_strided_slice %31 {offsets = [0, 0], sizes = [1, 32], strides = [1, 1]} : vector<8x32xf32> to vector<1x32xf32>
    %36 = vector.broadcast %35 : vector<1x32xf32> to vector<16x32xf32>
    %37 = arith.addf %34, %36 : vector<16x32xf32>
    %38 = vector.extract_strided_slice %31 {offsets = [1, 0], sizes = [1, 32], strides = [1, 1]} : vector<8x32xf32> to vector<1x32xf32>
    %39 = vector.extract_strided_slice %31 {offsets = [2, 0], sizes = [1, 32], strides = [1, 1]} : vector<8x32xf32> to vector<1x32xf32>
    %cst_7 = arith.constant dense<0.000000e+00> : vector<16xf32>
    %40 = vector.multi_reduction <add>, %37, %cst_7 [1] : vector<16x32xf32> to vector<16xf32>
    %41 = vector.shape_cast %40 : vector<16xf32> to vector<16x1xf32>
    %cst_8 = arith.constant 3.200000e+01 : f32
    %42 = vector.broadcast %cst_8 : f32 to vector<16x1xf32>
    %43 = arith.divf %41, %42 : vector<16x1xf32>
    %44 = vector.broadcast %43 : vector<16x1xf32> to vector<16x32xf32>
    %45 = arith.subf %37, %44 : vector<16x32xf32>
    %46 = arith.mulf %45, %45 : vector<16x32xf32>
    %cst_9 = arith.constant dense<0.000000e+00> : vector<16xf32>
    %47 = vector.multi_reduction <add>, %46, %cst_9 [1] : vector<16x32xf32> to vector<16xf32>
    %48 = vector.shape_cast %47 : vector<16xf32> to vector<16x1xf32>
    %cst_10 = arith.constant 3.200000e+01 : f32
    %49 = vector.broadcast %cst_10 : f32 to vector<16x1xf32>
    %50 = arith.divf %48, %49 : vector<16x1xf32>
    %51 = vector.broadcast %43 : vector<16x1xf32> to vector<16x32xf32>
    %52 = arith.subf %37, %51 : vector<16x32xf32>
    %cst_11 = arith.constant 9.99999974E-6 : f32
    %53 = vector.broadcast %cst_11 : f32 to vector<16x1xf32>
    %54 = arith.addf %50, %53 : vector<16x1xf32>
    %55 = math.rsqrt %54 : vector<16x1xf32>
    %56 = vector.broadcast %55 : vector<16x1xf32> to vector<16x32xf32>
    %57 = arith.mulf %52, %56 : vector<16x32xf32>
    %58 = vector.broadcast %38 : vector<1x32xf32> to vector<16x32xf32>
    %59 = arith.mulf %57, %58 : vector<16x32xf32>
    %60 = vector.broadcast %39 : vector<1x32xf32> to vector<16x32xf32>
    %61 = arith.addf %59, %60 : vector<16x32xf32>
    %cst_12 = arith.constant 0.000000e+00 : f32
    %62 = vector.broadcast %cst_12 : f32 to vector<16x32xf32>
    %63 = arith.maximumf %61, %62 : vector<16x32xf32>
    %cst_13 = arith.constant dense<0.000000e+00> : vector<16x32xf32>
    %64 = tpu.matmul %63, %32, %cst_13 {dimension_numbers = #tpu.dot_dimension_numbers<[1], [0], [0], [1], [0, 0, 1, 1], [], []>} : vector<16x32xf32>, vector<32x32xf32>, vector<16x32xf32> -> vector<16x32xf32>
    %65 = vector.extract_strided_slice %33 {offsets = [0, 0], sizes = [1, 32], strides = [1, 1]} : vector<8x32xf32> to vector<1x32xf32>
    %66 = vector.broadcast %65 : vector<1x32xf32> to vector<16x32xf32>
    %67 = arith.addf %64, %66 : vector<16x32xf32>
    %68 = vector.extract_strided_slice %33 {offsets = [1, 0], sizes = [1, 32], strides = [1, 1]} : vector<8x32xf32> to vector<1x32xf32>
    %69 = vector.extract_strided_slice %33 {offsets = [2, 0], sizes = [1, 32], strides = [1, 1]} : vector<8x32xf32> to vector<1x32xf32>
    %cst_14 = arith.constant dense<0.000000e+00> : vector<16xf32>
    %70 = vector.multi_reduction <add>, %67, %cst_14 [1] : vector<16x32xf32> to vector<16xf32>
    %71 = vector.shape_cast %70 : vector<16xf32> to vector<16x1xf32>
    %cst_15 = arith.constant 3.200000e+01 : f32
    %72 = vector.broadcast %cst_15 : f32 to vector<16x1xf32>
    %73 = arith.divf %71, %72 : vector<16x1xf32>
    %74 = vector.broadcast %73 : vector<16x1xf32> to vector<16x32xf32>
    %75 = arith.subf %67, %74 : vector<16x32xf32>
    %76 = arith.mulf %75, %75 : vector<16x32xf32>
    %cst_16 = arith.constant dense<0.000000e+00> : vector<16xf32>
    %77 = vector.multi_reduction <add>, %76, %cst_16 [1] : vector<16x32xf32> to vector<16xf32>
    %78 = vector.shape_cast %77 : vector<16xf32> to vector<16x1xf32>
    %cst_17 = arith.constant 3.200000e+01 : f32
    %79 = vector.broadcast %cst_17 : f32 to vector<16x1xf32>
    %80 = arith.divf %78, %79 : vector<16x1xf32>
    %81 = vector.broadcast %73 : vector<16x1xf32> to vector<16x32xf32>
    %82 = arith.subf %67, %81 : vector<16x32xf32>
    %cst_18 = arith.constant 9.99999974E-6 : f32
    %83 = vector.broadcast %cst_18 : f32 to vector<16x1xf32>
    %84 = arith.addf %80, %83 : vector<16x1xf32>
    %85 = math.rsqrt %84 : vector<16x1xf32>
    %86 = vector.broadcast %85 : vector<16x1xf32> to vector<16x32xf32>
    %87 = arith.mulf %82, %86 : vector<16x32xf32>
    %88 = vector.broadcast %68 : vector<1x32xf32> to vector<16x32xf32>
    %89 = arith.mulf %87, %88 : vector<16x32xf32>
    %90 = vector.broadcast %69 : vector<1x32xf32> to vector<16x32xf32>
    %91 = arith.addf %89, %90 : vector<16x32xf32>
    %cst_19 = arith.constant 0.000000e+00 : f32
    %92 = vector.broadcast %cst_19 : f32 to vector<16x32xf32>
    %93 = arith.maximumf %91, %92 : vector<16x32xf32>
    %94 = vector.shape_cast %93 : vector<16x32xf32> to vector<2x8x32xf32>
    %cst_20 = arith.constant dense<0xFF800000> : vector<2x32xf32>
    %95 = vector.multi_reduction <maximumf>, %94, %cst_20 [1] : vector<2x8x32xf32> to vector<2x32xf32>
    %c0_21 = arith.constant 0 : index
    %c0_22 = arith.constant 0 : index
    %96 = vector.load %arg2[%c0_21, %c0_22] : memref<2x32xf32, #tpu.memory_space<vmem>>, vector<2x32xf32>
    tpu.vector_store %arg2[%c0_21, %c0_22], %95 {strides = array<i32>} : memref<2x32xf32, #tpu.memory_space<vmem>>, vector<2x32xf32>,
    return
  }
}

</mosaic_0001>

<llo_original>
// kernel: tpu_custom_call.1
$region0: #{tpu_custom_call.1}
  #allocation0 [shape = 'u32[]', space=smem, size = 0x4, offset = 0x4, fixed_abs, tag = 'smem constant byte address 0x4 - core index']
  #allocation1 [shape = 'u32[144,128]{1,0:T(1,128)}', space=vmem, size = 0x12000, scoped, tag = 'internal scratch']
  %s0 = inlined_call_operand.vmem [shape: f32[16,4], index: 0, kind: input, shape index: {}]
  %s1 = inlined_call_operand.vmem [shape: f32[64,32], index: 1, kind: input, shape index: {}]
  %s2 = inlined_call_operand.hbm [shape: f32[2,32], index: 2, kind: output, shape index: {}]
  %s3 = sld [smem:[#allocation0]]
  $region18: #{tpu_custom_call.1} parent=0
    _
  %s5 = ssub.s32 1, %s3
  %s6 = scalar_select 0, %s5, %s3
  $region1: #{tpu_custom_call.1} parent=0
    #allocation2 [shape = 'u8[1024]{0}', space=vmem, size = 0x400, scoped, tag = 'output window, operand 0, single buffered']
    #allocation3 [shape = 's32[1]{0}', space=sflag, size = 0x4, scoped, tag = 'scoped memory for tpu_custom_call.1']
    %7 = vsyncpa [#allocation3], 0
    // Predicated region
    $region2: #{tpu_custom_call.1} parent=1 // pred_check
      _
    $region3: #{tpu_custom_call.1} parent=1 // pred_check_branch
      %9 = sbr.rel (0) target = $region5
    $region4: #{tpu_custom_call.1} parent=1 // pred_region
      _
    $region5: #{tpu_custom_call.1} parent=1 // pred_fallthru
      _
    // Predicated region
    $region6: #{tpu_custom_call.1} parent=1 // pred_check
      _
    $region7: #{tpu_custom_call.1} parent=1 // pred_check_branch
      %11 = sbr.rel (0) target = $region9
    $region8: #{tpu_custom_call.1} parent=1 // pred_region
      _
    $region9: #{tpu_custom_call.1} parent=1 // pred_fallthru
      _
    %v12 = vld [vmem:[%s0] sm:$0xff]
    %v13 = vld [vmem:[%s0 + $0x8] sm:$0xff]
    %v14 = vcvt.f32.s32.to.zero.pseudo %v12
    %v15 = vcvt.f32.s32.to.zero.pseudo %v13
    %v16 = vmul.f32 %v12, 0.1
    %v17 = vmul.f32 %v13, 0.1
    %v18 = vlaneseq
    %v19 = vand.u32 %v18, 127
    %20 = vset.pattern.permute.xlu0 0
    %21 = vperm.xlu0 %20, %v14
    %v22 = vpop.permute.xlu0 %21
    %23 = vset.pattern.permute.xlu0 0
    %24 = vperm.xlu0 %23, %v15
    %v25 = vpop.permute.xlu0 %24
    %vm26 = vcmp.eq.s32.totalorder %v19, %v22
    %vm27 = vcmp.eq.s32.totalorder %v19, %v25
    %v28 = vsel %vm26, 1, 0
    %v29 = vsel %vm27, 1, 0
    %v30 = vcvt.s32.f32 %v28
    %v31 = vcvt.s32.f32 %v29
    %v32 = vsub.s32 14, %v19
    %vm33 = vcmp.gt.s32.totalorder %v32, 0
    %v34 = vsel %vm33, %v32, 0
    %35 = vset.pattern.permute.xlu0 1
    %36 = vperm.xlu0 %35, %v14
    %v37 = vpop.permute.xlu0 %36
    %38 = vset.pattern.permute.xlu0 1
    %39 = vperm.xlu0 %38, %v15
    %v40 = vpop.permute.xlu0 %39
    %v41 = vshra.s32 %v37, %v34
    %v42 = vshra.s32 %v40, %v34
    %v43 = vand.u32 %v41, 1
    %v44 = vand.u32 %v42, 1
    %v45 = vcvt.s32.f32 %v43
    %v46 = vcvt.s32.f32 %v44
    %vm47 = vcmp.lt.s32.totalorder %v19, 8
    %vm48 = vcmp.lt.s32.totalorder %v19, 15
    %50 = vset.pattern.permute.xlu0 2
    %51 = vperm.xlu0 %50, %v16
    %v52 = vpop.permute.xlu0 %51
    %55 = vset.pattern.permute.xlu0 2
    %56 = vperm.xlu0 %55, %v17
    %v57 = vpop.permute.xlu0 %56
    %v59 = vsel %vm48, %v45, %v52
    %v60 = vsel %vm48, %v46, %v57
    %v61 = vsel %vm47, %v30, %v59
    %v62 = vsel %vm47, %v31, %v60
    %v63 = vld [vmem:[%s1] sm:$0xff]
    %v64 = vld [vmem:[%s1 + $0x8] sm:$0xff]
    %v65 = vld [vmem:[%s1 + $0x10] sm:$0xff]
    %v66 = vld [vmem:[%s1 + $0x18] sm:$0xff]
    %v67 = vld [vmem:[%s1 + $0x20] sm:$0xff]
    %v68 = vld [vmem:[%s1 + $0x28] sm:$0xff]
    %v69 = vld [vmem:[%s1 + $0x30] sm:$0xff]
    %v70 = vld [vmem:[%s1 + $0x38] sm:$0xff]
    %v71 = vlaneseq
    %v72 = vshrl.u32 %v71, 7
    %v73 = vsub.s32 0, %v72
    %v74 = vrot.slane %v65, %v73
    %vm75 = vcmask 130048
    %v77 = vsel %vm75, %v61, 0
    %v80 = vsel %vm75, %v62, 0
    %82 = vmatprep.subr.mxu0 0.0
    %83 = vmatpush1.msra.mxu0 %v63
    %84 = vmatprep.subr.mxu0 0.0
    %85 = vmatpush1.msra.mxu0 %v64
    %86 = vmatprep.subr.mxu0 0.0
    %87 = vmatpush1.msra.mxu0 0.0
    %88 = vmatprep.subr.mxu0 0.0
    %89 = vmatpush1.msra.mxu0 0.0
    %90 = vmatprep.subr.mxu0 0.0
    %91 = vmatpush1.msra.mxu0 0.0
    %92 = vmatprep.subr.mxu0 0.0
    %93 = vmatpush1.msra.mxu0 0.0
    %94 = vmatprep.subr.mxu0 0.0
    %95 = vmatpush1.msra.mxu0 0.0
    %96 = vmatprep.subr.mxu0 0.0
    %97 = vmatpush1.msra.mxu0 0.0
    %98 = vmatprep.subr.mxu0 0.0
    %99 = vmatpush1.msra.mxu0 0.0
    %100 = vmatprep.subr.mxu0 0.0
    %101 = vmatpush1.msra.mxu0 0.0
    %102 = vmatprep.subr.mxu0 0.0
    %103 = vmatpush1.msra.mxu0 0.0
    %104 = vmatprep.subr.mxu0 0.0
    %105 = vmatpush1.msra.mxu0 0.0
    %106 = vmatprep.subr.mxu0 0.0
    %107 = vmatpush1.msra.mxu0 0.0
    %108 = vmatprep.subr.mxu0 0.0
    %109 = vmatpush1.msra.mxu0 0.0
    %110 = vmatprep.subr.mxu0 0.0
    %111 = vmatpush1.msra.mxu0 0.0
    %112 = vmatprep.subr.mxu0 0.0
    %113 = vmatpush1.msra.mxu0 0.0
    %114 = vmatprep.subr.mxu0 0.0
    %115 = vmatpush1.msra.mxu0 0.0
    %116 = vmatprep.subr.mxu0 0.0
    %117 = vmatpush1.msra.mxu0 0.0
    %118 = vmatprep.subr.mxu0 0.0
    %119 = vmatpush1.msra.mxu0 0.0
    %120 = vmatprep.subr.mxu0 0.0
    %121 = vmatpush1.msra.mxu0 0.0
    %122 = vmatprep.subr.mxu0 0.0
    %123 = vmatpush1.msra.mxu0 0.0
    %124 = vmatprep.subr.mxu0 0.0
    %125 = vmatpush1.msra.mxu0 0.0
    %126 = vmatprep.subr.mxu0 0.0
    %127 = vmatpush1.msra.mxu0 0.0
    %128 = vmatprep.subr.mxu0 0.0
    %129 = vmatpush1.msra.mxu0 0.0
    %130 = vmatprep.subr.mxu0 0.0
    %131 = vmatpush1.msra.mxu0 0.0
    %132 = vmatprep.subr.mxu0 0.0
    %133 = vmatpush1.msra.mxu0 0.0
    %134 = vmatprep.subr.mxu0 0.0
    %135 = vmatpush1.msra.mxu0 0.0
    %136 = vmatprep.subr.mxu0 0.0
    %137 = vmatpush1.msra.mxu0 0.0
    %138 = vmatprep.subr.mxu0 0.0
    %139 = vmatpush1.msra.mxu0 0.0
    %140 = vmatprep.subr.mxu0 0.0
    %141 = vmatpush1.msra.mxu0 0.0
    %142 = vmatprep.subr.mxu0 0.0
    %143 = vmatpush1.msra.mxu0 0.0
    %144 = vmatprep.subr.mxu0 0.0
    %145 = vmatpush1.msra.mxu0 0.0
    %146 = vmatprep.mubr.f32.mxu0 0.0
    %147 = vmatmul.mubr.f32.gmra.mrb[0].mxu0 %v77
    %v148 = vpop.f32.mrb[0].mxu0
    %v149 = vadd.f32 %v74, %v148
    %v150 = vpop.f32.mrb[0].mxu0
    %151 = vmatprep.mubr.f32.mxu0 0.0
    %152 = vmatmul.mubr.f32.gmra.mrb[0].mxu0 %v80
    %v153 = vpop.f32.mrb[0].mxu0
    %v154 = vadd.f32 %v74, %v153
    %v155 = vpop.f32.mrb[0].mxu0
    %156 = vdwg.mxu0
    %vm157 = vcmask 261120
    %v158 = vsel %vm157, %v149, 0.0
    %159 = vadd.xlane.f32.xlu0 %v158
    %v160 = vpop.xlane.xlu0 %159
    %v161 = vsel %vm157, %v154, 0.0
    %162 = vadd.xlane.f32.xlu0 %v161
    %v163 = vpop.xlane.xlu0 %162
    %v164 = vrcp.pop 32.0
    %v165 = vmul.f32 %v160, %v164
    %v166 = vmul.f32 %v163, %v164
    %v167 = vsub.f32 %v149, %v165
    %v168 = vsub.f32 %v154, %v166
    %v169 = vmul.f32 %v167, %v167
    %v170 = vmul.f32 %v168, %v168
    %v171 = vsel %vm157, %v169, 0.0
    %172 = vadd.xlane.f32.xlu0 %v171
    %v173 = vpop.xlane.xlu0 %172
    %v174 = vsel %vm157, %v170, 0.0
    %175 = vadd.xlane.f32.xlu0 %v174
    %v176 = vpop.xlane.xlu0 %175
    %v177 = vmul.f32 %v173, %v164
    %v178 = vmul.f32 %v176, %v164
    %v179 = vadd.f32 %v177, 1e-05
    %v180 = vadd.f32 %v178, 1e-05
    %v181 = vrsqrt.pop %v179
    %v182 = vrsqrt.pop %v180
    %v183 = vmul.f32 %v167, %v181
    %v184 = vmul.f32 %v168, %v182
    %v185 = vlaneseq
    %v186 = vshrl.u32 %v185, 7
    %v187 = vsub.s32 1, %v186
    %v188 = vrot.slane %v65, %v187
    %v189 = vmul.f32 %v183, %v188
    %v190 = vmul.f32 %v184, %v188
    %v191 = vlaneseq
    %v192 = vshrl.u32 %v191, 7
    %v193 = vsub.s32 2, %v192
    %v194 = vrot.slane %v65, %v193
    %v195 = vadd.f32 %v189, %v194
    %v196 = vadd.f32 %v190, %v194
    %v197 = vmax.f32 %v195, 0.0
    %v198 = vmax.f32 %v196, 0.0
    %v199 = vlaneseq
    %v200 = vshrl.u32 %v199, 7
    %v201 = vsub.s32 0, %v200
    %v202 = vrot.slane %v70, %v201
    %v204 = vsel %vm157, %v197, 0
    %v207 = vsel %vm157, %v198, 0
    %209 = vmatprep.subr.mxu0 0.0
    %210 = vmatpush1.msra.mxu0 %v66
    %211 = vmatprep.subr.mxu0 0.0
    %212 = vmatpush1.msra.mxu0 %v67
    %213 = vmatprep.subr.mxu0 0.0
    %214 = vmatpush1.msra.mxu0 %v68
    %215 = vmatprep.subr.mxu0 0.0
    %216 = vmatpush1.msra.mxu0 %v69
    %217 = vmatprep.subr.mxu0 0.0
    %218 = vmatpush1.msra.mxu0 0.0
    %219 = vmatprep.subr.mxu0 0.0
    %220 = vmatpush1.msra.mxu0 0.0
    %221 = vmatprep.subr.mxu0 0.0
    %222 = vmatpush1.msra.mxu0 0.0
    %223 = vmatprep.subr.mxu0 0.0
    %224 = vmatpush1.msra.mxu0 0.0
    %225 = vmatprep.subr.mxu0 0.0
    %226 = vmatpush1.msra.mxu0 0.0
    %227 = vmatprep.subr.mxu0 0.0
    %228 = vmatpush1.msra.mxu0 0.0
    %229 = vmatprep.subr.mxu0 0.0
    %230 = vmatpush1.msra.mxu0 0.0
    %231 = vmatprep.subr.mxu0 0.0
    %232 = vmatpush1.msra.mxu0 0.0
    %233 = vmatprep.subr.mxu0 0.0
    %234 = vmatpush1.msra.mxu0 0.0
    %235 = vmatprep.subr.mxu0 0.0
    %236 = vmatpush1.msra.mxu0 0.0
    %237 = vmatprep.subr.mxu0 0.0
    %238 = vmatpush1.msra.mxu0 0.0
    %239 = vmatprep.subr.mxu0 0.0
    %240 = vmatpush1.msra.mxu0 0.0
    %241 = vmatprep.subr.mxu0 0.0
    %242 = vmatpush1.msra.mxu0 0.0
    %243 = vmatprep.subr.mxu0 0.0
    %244 = vmatpush1.msra.mxu0 0.0
    %245 = vmatprep.subr.mxu0 0.0
    %246 = vmatpush1.msra.mxu0 0.0
    %247 = vmatprep.subr.mxu0 0.0
    %248 = vmatpush1.msra.mxu0 0.0
    %249 = vmatprep.subr.mxu0 0.0
    %250 = vmatpush1.msra.mxu0 0.0
    %251 = vmatprep.subr.mxu0 0.0
    %252 = vmatpush1.msra.mxu0 0.0
    %253 = vmatprep.subr.mxu0 0.0
    %254 = vmatpush1.msra.mxu0 0.0
    %255 = vmatprep.subr.mxu0 0.0
    %256 = vmatpush1.msra.mxu0 0.0
    %257 = vmatprep.subr.mxu0 0.0
    %258 = vmatpush1.msra.mxu0 0.0
    %259 = vmatprep.subr.mxu0 0.0
    %260 = vmatpush1.msra.mxu0 0.0
    %261 = vmatprep.subr.mxu0 0.0
    %262 = vmatpush1.msra.mxu0 0.0
    %263 = vmatprep.subr.mxu0 0.0
    %264 = vmatpush1.msra.mxu0 0.0
    %265 = vmatprep.subr.mxu0 0.0
    %266 = vmatpush1.msra.mxu0 0.0
    %267 = vmatprep.subr.mxu0 0.0
    %268 = vmatpush1.msra.mxu0 0.0
    %269 = vmatprep.subr.mxu0 0.0
    %270 = vmatpush1.msra.mxu0 0.0
    %271 = vmatprep.subr.mxu0 0.0
    %272 = vmatpush1.msra.mxu0 0.0
    %273 = vmatprep.mubr.f32.mxu0 0.0
    %274 = vmatmul.mubr.f32.gmra.mrb[0].mxu0 %v204
    %v275 = vpop.f32.mrb[0].mxu0
    %v276 = vadd.f32 %v202, %v275
    %v277 = vpop.f32.mrb[0].mxu0
    %278 = vmatprep.mubr.f32.mxu0 0.0
    %279 = vmatmul.mubr.f32.gmra.mrb[0].mxu0 %v207
    %v280 = vpop.f32.mrb[0].mxu0
    %v281 = vadd.f32 %v202, %v280
    %v282 = vpop.f32.mrb[0].mxu0
    %283 = vdwg.mxu0
    %v284 = vsel %vm157, %v276, 0.0
    %285 = vadd.xlane.f32.xlu0 %v284
    %v286 = vpop.xlane.xlu0 %285
    %v287 = vsel %vm157, %v281, 0.0
    %288 = vadd.xlane.f32.xlu0 %v287
    %v289 = vpop.xlane.xlu0 %288
    %v290 = vmul.f32 %v286, %v164
    %v291 = vmul.f32 %v289, %v164
    %v292 = vsub.f32 %v276, %v290
    %v293 = vsub.f32 %v281, %v291
    %v294 = vmul.f32 %v292, %v292
    %v295 = vmul.f32 %v293, %v293
    %v296 = vsel %vm157, %v294, 0.0
    %297 = vadd.xlane.f32.xlu0 %v296
    %v298 = vpop.xlane.xlu0 %297
    %v299 = vsel %vm157, %v295, 0.0
    %300 = vadd.xlane.f32.xlu0 %v299
    %v301 = vpop.xlane.xlu0 %300
    %v302 = vmul.f32 %v298, %v164
    %v303 = vmul.f32 %v301, %v164
    %v304 = vadd.f32 %v302, 1e-05
    %v305 = vadd.f32 %v303, 1e-05
    %v306 = vrsqrt.pop %v304
    %v307 = vrsqrt.pop %v305
    %v308 = vmul.f32 %v292, %v306
    %v309 = vmul.f32 %v293, %v307
    %v310 = vlaneseq
    %v311 = vshrl.u32 %v310, 7
    %v312 = vsub.s32 1, %v311
    %v313 = vrot.slane %v70, %v312
    %v314 = vmul.f32 %v308, %v313
    %v315 = vmul.f32 %v309, %v313
    %v316 = vlaneseq
    %v317 = vshrl.u32 %v316, 7
    %v318 = vsub.s32 2, %v317
    %v319 = vrot.slane %v70, %v318
    %v320 = vadd.f32 %v314, %v319
    %v321 = vadd.f32 %v315, %v319
    %v322 = vmax.f32 %v320, 0.0
    %v323 = vmax.f32 %v321, 0.0
    %v324 = vsel %vm157, %v322, -inf
    %v325 = vrot.slane %v324, 4
    %v326 = vmax.f32 %v324, %v325
    %v327 = vrot.slane %v326, 2
    %v328 = vmax.f32 %v326, %v327
    %v329 = vrot.slane %v328, 1
    %v330 = vmax.f32 %v328, %v329
    %v331 = vsel %vm157, %v323, -inf
    %v332 = vrot.slane %v331, 4
    %v333 = vmax.f32 %v331, %v332
    %v334 = vrot.slane %v333, 2
    %v335 = vmax.f32 %v333, %v334
    %v336 = vrot.slane %v335, 1
    %v337 = vmax.f32 %v335, %v336
    %vm340 = vcmask 1041409
    %v341 = vsel %vm340, %v337, %v330
    %vm343 = vcmask 254976
    %344 = vst.msk [vmem:[#allocation2] sm:$0x3] %vm343, %v341
    // Predicated region
    $region10: #{tpu_custom_call.1} parent=1 // pred_check
      _
    $region11: #{tpu_custom_call.1} parent=1 // pred_check_branch
      %346 = sbr.rel (0) target = $region13
    $region12: #{tpu_custom_call.1} parent=1 // pred_region
      %s348 = ssub.s32 32, 32
      %349 = vsyncadd [#allocation3], %s348
      %s351 = sshll.u32 [#allocation2], 4
      %s352 = int_to_ptr.vmem [resolvable:$true] %s351
      %354 = dma.vmem_to_hbm [thread:$0]  %s352, 32, %s2, [#allocation3]
    $region13: #{tpu_custom_call.1} parent=1 // pred_fallthru
      _
    // Predicated region
    $region14: #{tpu_custom_call.1} parent=1 // pred_check
      _
    $region15: #{tpu_custom_call.1} parent=1 // pred_check_branch
      %356 = sbr.rel (0) target = $region17
    $region16: #{tpu_custom_call.1} parent=1 // pred_region
      %357 = dma.done [#allocation3], 32
    $region17: #{tpu_custom_call.1} parent=1 // pred_fallthru
      _
    %358 = vsyncpa [#allocation3], 1

</llo_original>
